<compile_context>
chip_gen: v7x
topology: tpu7x:2x2x1
jax: 0.10.0
libtpu: 0.0.40
codegen_flags: <defaults>
</compile_context>

<pallas_src>
import jax
import jax.numpy as jnp
from jax import lax
from jax.experimental import pallas as pl
from jax.experimental.pallas import tpu as pltpu

NEG_INF = -1e30  # finite "minus infinity": keeps exp() free of inf-inf NaNs


# ----------------------------------------------------------------------------
# Stage 1: fused QKV projection, head-major (B, H, T, d_h) outputs
# ----------------------------------------------------------------------------
def _make_qkv_kernel(num_heads, d_h):
    def qkv_kernel(x_ref, wq_ref, wk_ref, wv_ref, q_ref, k_ref, v_ref):
        x = x_ref[0]                                    # (tr, d_in), native dtype
        for w_ref, o_ref in ((wq_ref, q_ref), (wk_ref, k_ref), (wv_ref, v_ref)):
            # One wide matmul: deep d_in contraction, full d_out-wide output.
            y = jnp.dot(x, w_ref[...], preferred_element_type=jnp.float32)
            # Scatter columns into head-major layout (static slices; this
            # happens once per element, unlike the per-kv-step per-head
            # slicing the previous Stage-2 kernel did).
            for h in range(num_heads):
                o_ref[0, h] = y[:, h * d_h:(h + 1) * d_h].astype(o_ref.dtype)
    return qkv_kernel


# ----------------------------------------------------------------------------
# Stage 2: causal flash attention (heads batched) + fused output projection
# ----------------------------------------------------------------------------
def _make_attn_kernel(num_heads, d_h, tq, tkv):
    d_out = num_heads * d_h

    def flash_update(i, j, q_ref, k_ref, v_ref, m_sc, l_sc, acc_sc, masked):
        q = q_ref[0]                                   # (H, tq,  d_h) native dtype
        k = k_ref[0]                                   # (H, tkv, d_h)
        v = v_ref[0]                                   # (H, tkv, d_h)

        # All heads in one leading-batch MXU einsum; Q is pre-scaled by
        # 1/sqrt(d_h) (folded into Wq in the wrapper).  f32 accumulation.
        s = jnp.einsum("hqd,hkd->hqk", q, k,
                       preferred_element_type=jnp.float32)   # (H, tq, tkv)

        if masked:  # only diagonal-straddling tiles pay for the iota + select
            q_idx = i * tq + lax.broadcasted_iota(jnp.int32, (tq, tkv), 0)
            k_idx = j * tkv + lax.broadcasted_iota(jnp.int32, (tq, tkv), 1)
            s = jnp.where((k_idx <= q_idx)[None, :, :], s, NEG_INF)

        m_prev = m_sc[...]                             # (H, tq)
        m_new = jnp.maximum(m_prev, jnp.max(s, axis=-1))
        alpha = jnp.exp(m_prev - m_new)                # (H, tq)
        p = jnp.exp(s - m_new[:, :, None])             # (H, tq, tkv) f32
        l_sc[...] = alpha * l_sc[...] + jnp.sum(p, axis=-1)
        acc_sc[...] = alpha[:, :, None] * acc_sc[...] + jnp.einsum(
            "hqk,hkd->hqd", p.astype(v.dtype), v,
            preferred_element_type=jnp.float32)
        m_sc[...] = m_new

    def attn_kernel(q_ref, k_ref, v_ref, wo_ref, bo_ref, o_ref,
                    m_sc, l_sc, acc_sc):
        i = pl.program_id(1)            # query-tile index
        j = pl.program_id(2)            # kv-tile index (reduction axis, last)
        nj = pl.num_programs(2)

        @pl.when(j == 0)
        def _init():
            m_sc[...] = jnp.full(m_sc.shape, NEG_INF, m_sc.dtype)
            l_sc[...] = jnp.zeros(l_sc.shape, l_sc.dtype)
            acc_sc[...] = jnp.zeros(acc_sc.shape, acc_sc.dtype)

        # Block classification: fully-below-diagonal tiles need no mask; only
        # diagonal tiles are masked; above-diagonal tiles do nothing (and their
        # K/V DMAs are skipped by the clamped index_map in the wrapper).
        below_diag = (j + 1) * tkv <= i * tq + 1
        on_diag = jnp.logical_and(j * tkv < (i + 1) * tq,
                                  jnp.logical_not(below_diag))

        @pl.when(below_diag)
        def _unmasked():
            flash_update(i, j, q_ref, k_ref, v_ref, m_sc, l_sc, acc_sc,
                         masked=False)

        @pl.when(on_diag)
        def _masked():
            flash_update(i, j, q_ref, k_ref, v_ref, m_sc, l_sc, acc_sc,
                         masked=True)

        @pl.when(j == nj - 1)
        def _finalize():
            # TODO(synk): attention dropout (p=0.2) is identity in eval mode;
            # train-mode stochastic dropout is not implemented.
            inv_l = pl.reciprocal(l_sc[...], approx=True)      # EUP slot, ~free
            z = acc_sc[...] * inv_l[:, :, None]                # (H, tq, d_h) f32
            out = bo_ref[...].astype(jnp.float32)              # (1, d_out)
            # Output projection from head-split Wo (H, d_h, d_out): leading-dim
            # indexing only, no lane slicing and no concatenate.
            for h in range(num_heads):                         # epilogue only
                out = out + jnp.dot(z[h].astype(wo_ref.dtype), wo_ref[h],
                                    preferred_element_type=jnp.float32)
            o_ref[0] = out.astype(o_ref.dtype)

    return attn_kernel


# ----------------------------------------------------------------------------
# Tile-size / VMEM helpers
# ----------------------------------------------------------------------------
def _pick_t_tile(T, batch):
    # Stage-1 row tile: biggest multiple-of-8 divisor of T (<=512) that still
    # yields >=2 parallel grid steps (both v7x TensorCores get work).
    for cand in (512, 256, 128, 64, 32, 16, 8):
        if T % cand == 0 and batch * (T // cand) >= 2:
            return cand
    return T


def _pick_q_tile(T, batch):
    for cand in (256, 128, 64, 32, 16, 8):
        if T % cand == 0 and batch * (T // cand) >= 2:
            return cand
    return T


def _pick_kv_tile(T):
    for cand in (256, 128, 64, 32, 16, 8):
        if T % cand == 0:
            return cand
    return T


def _vmem_limit_bytes():
    # v7x has 64 MiB of VMEM per TensorCore (v5e/v6e: 128 MiB); request a
    # generous but generation-safe scoped budget.
    try:
        phys = int(pltpu.get_tpu_info().vmem_capacity_bytes)
    except Exception:
        phys = 128 * 1024 * 1024
    return int(min(64 * 1024 * 1024, (phys * 3) // 4))


# ----------------------------------------------------------------------------
# Wrapper
# ----------------------------------------------------------------------------
def multi_head_causal_self_attention(x, wq, wk, wv, wo, bo, *, num_heads,
                                     qkv_dtype=None):
    """x: (B, T, d_in); wq/wk/wv: (d_in, d_out); wo: (d_out, d_out); bo: (d_out,)."""
    B, T, d_in = x.shape
    d_out = wq.shape[1]
    assert d_out % num_heads == 0, "d_out must be divisible by num_heads"
    d_h = d_out // num_heads
    dtype = x.dtype
    # Q/K/V can be emitted in bf16 (qkv_dtype=jnp.bfloat16) to halve the
    # inter-stage HBM traffic; default keeps the input dtype for exactness.
    qkv_dtype = dtype if qkv_dtype is None else qkv_dtype
    vmem_limit = _vmem_limit_bytes()
    item = jnp.dtype(dtype).itemsize
    qkv_item = jnp.dtype(qkv_dtype).itemsize

    # Fold the 1/sqrt(d_h) attention scale into Wq once (zero per-step cost).
    scale = 1.0 / float(d_h) ** 0.5
    wq_s = (wq * scale).astype(wq.dtype)

    # ---------------- Stage 1: fused QKV projection, head-major out ----------
    # TODO(synk): qkv_bias=True variant not implemented (module default False).
    tr = _pick_t_tile(T, B)
    assert T % tr == 0

    qkv_cost = pl.CostEstimate(
        flops=int(2 * B * T * d_in * 3 * d_out),
        transcendentals=0,
        bytes_accessed=int(item * (B * T * d_in + 3 * d_in * d_out)
                           + qkv_item * 3 * B * T * d_out),
    )
    qkv_shape = jax.ShapeDtypeStruct((B, num_heads, T, d_h), qkv_dtype)
    # TODO(synk): grid-invariant weight operands would ideally be
    # single-buffered (pipeline_mode=pl.Buffered(1)) to save VMEM on v7x.
    q, k, v = pl.pallas_call(
        _make_qkv_kernel(num_heads, d_h),
        out_shape=(qkv_shape, qkv_shape, qkv_shape),
        grid_spec=pltpu.PrefetchScalarGridSpec(
            num_scalar_prefetch=0,
            grid=(B, T // tr),
            in_specs=[
                pl.BlockSpec((1, tr, d_in), lambda b, t: (b, t, 0)),
                pl.BlockSpec((d_in, d_out), lambda b, t: (0, 0)),
                pl.BlockSpec((d_in, d_out), lambda b, t: (0, 0)),
                pl.BlockSpec((d_in, d_out), lambda b, t: (0, 0)),
            ],
            out_specs=[
                pl.BlockSpec((1, num_heads, tr, d_h), lambda b, t: (b, 0, t, 0)),
                pl.BlockSpec((1, num_heads, tr, d_h), lambda b, t: (b, 0, t, 0)),
                pl.BlockSpec((1, num_heads, tr, d_h), lambda b, t: (b, 0, t, 0)),
            ],
        ),
        compiler_params=pltpu.CompilerParams(
            dimension_semantics=("parallel", "parallel"),
            vmem_limit_bytes=vmem_limit,
        ),
        cost_estimate=qkv_cost,
    )(x, wq_s, wk, wv)

    # ------------- Stage 2: causal flash attention + output projection -------
    tq = _pick_q_tile(T, B)
    tkv = _pick_kv_tile(T)
    assert T % tq == 0 and T % tkv == 0

    wo_r = wo.reshape(num_heads, d_h, d_out)    # head-split Wo (leading index)
    bo2 = bo.reshape(1, d_out)

    def q_index(b, i, j):
        return (b, 0, i, 0)

    def kv_index(b, i, j):
        # Clamp the kv block index: tiles strictly above the causal diagonal
        # reuse the last useful block index, so Pallas skips their DMA.
        last_needed = ((i + 1) * tq - 1) // tkv
        return (b, 0, jnp.minimum(j, last_needed), 0)

    attn_cost = pl.CostEstimate(
        flops=int(4 * B * num_heads * T * T * d_h + 2 * B * T * d_out * d_out),
        transcendentals=int(B * num_heads * T * T),
        bytes_accessed=int(qkv_item * 3 * B * T * d_out
                           + item * (B * T * d_out + d_out * d_out + d_out)),
    )
    out = pl.pallas_call(
        _make_attn_kernel(num_heads, d_h, tq, tkv),
        out_shape=jax.ShapeDtypeStruct((B, T, d_out), dtype),
        grid_spec=pltpu.PrefetchScalarGridSpec(
            num_scalar_prefetch=0,
            grid=(B, T // tq, T // tkv),
            in_specs=[
                pl.BlockSpec((1, num_heads, tq, d_h), q_index),
                pl.BlockSpec((1, num_heads, tkv, d_h), kv_index),
                pl.BlockSpec((1, num_heads, tkv, d_h), kv_index),
                pl.BlockSpec((num_heads, d_h, d_out), lambda b, i, j: (0, 0, 0)),
                pl.BlockSpec((1, d_out), lambda b, i, j: (0, 0)),
            ],
            out_specs=pl.BlockSpec((1, tq, d_out), lambda b, i, j: (b, i, 0)),
            scratch_shapes=[
                pltpu.VMEM((num_heads, tq), jnp.float32),        # running max m
                pltpu.VMEM((num_heads, tq), jnp.float32),        # running sum l
                pltpu.VMEM((num_heads, tq, d_h), jnp.float32),   # context acc
            ],
        ),
        compiler_params=pltpu.CompilerParams(
            dimension_semantics=("parallel", "parallel", "arbitrary"),
            vmem_limit_bytes=vmem_limit,
        ),
        cost_estimate=attn_cost,
    )(q, k, v, wo_r, bo2)
    return out


# ----------------------------------------------------------------------------
# Pure-JAX reference (mirrors the PyTorch forward, eval mode)
# ----------------------------------------------------------------------------
def mhca_ref(x, wq, wk, wv, wo, bo, num_heads):
    B, T, _ = x.shape
    d_out = wq.shape[1]
    d_h = d_out // num_heads
    Q = (x @ wq).reshape(B, T, num_heads, d_h).transpose(0, 2, 1, 3)
    K = (x @ wk).reshape(B, T, num_heads, d_h).transpose(0, 2, 1, 3)
    V = (x @ wv).reshape(B, T, num_heads, d_h).transpose(0, 2, 1, 3)
    W = jnp.einsum("bhqd,bhkd->bhqk", Q, K) / jnp.sqrt(jnp.float32(d_h))
    causal = jnp.tril(jnp.ones((T, T), dtype=bool))
    W = jnp.where(causal[None, None], W, -jnp.inf)
    A = jax.nn.softmax(W, axis=-1)
    Z = jnp.einsum("bhqk,bhkd->bhqd", A, V)
    Z = Z.transpose(0, 2, 1, 3).reshape(B, T, d_out)
    return Z @ wo + bo[None, None, :]


if __name__ == "__main__":
    key = jax.random.PRNGKey(0)
    B, T, D_IN, D_OUT, H = 2, 8, 32, 32, 4   # small shapes matching forward()

    k0, k1, k2, k3, k4, k5 = jax.random.split(key, 6)
    x = jax.random.normal(k0, (B, T, D_IN), dtype=jnp.float32)
    bi = 1.0 / (D_IN ** 0.5)
    bo_scale = 1.0 / (D_OUT ** 0.5)
    wq = jax.random.uniform(k1, (D_IN, D_OUT), jnp.float32, -bi, bi)
    wk = jax.random.uniform(k2, (D_IN, D_OUT), jnp.float32, -bi, bi)
    wv = jax.random.uniform(k3, (D_IN, D_OUT), jnp.float32, -bi, bi)
    wo = jax.random.uniform(k4, (D_OUT, D_OUT), jnp.float32, -bo_scale, bo_scale)
    bo = jax.random.uniform(k5, (D_OUT,), jnp.float32, -bo_scale, bo_scale)

    out = multi_head_causal_self_attention(x, wq, wk, wv, wo, bo, num_heads=H)
    out = jax.block_until_ready(out)

    ref = mhca_ref(x, wq, wk, wv, wo, bo, H)
    assert out.shape == (B, T, D_OUT)
    max_err = float(jnp.max(jnp.abs(out - ref)))
    assert jnp.allclose(out, ref, atol=2e-2, rtol=2e-2), f"max abs err = {max_err}"

    print("KERNEL_OK")
</pallas_src>

<mosaic_0001>
module attributes {stable_mosaic.version = 11 : i64} {
  func.func @qkv_kernel(%arg0: i32, %arg1: i32, %arg2: memref<1x8x32xf32, #tpu.memory_space<vmem>>, %arg3: memref<32x32xf32, #tpu.memory_space<vmem>>, %arg4: memref<32x32xf32, #tpu.memory_space<vmem>>, %arg5: memref<32x32xf32, #tpu.memory_space<vmem>>, %arg6: memref<1x4x8x8xf32, #tpu.memory_space<vmem>>, %arg7: memref<1x4x8x8xf32, #tpu.memory_space<vmem>>, %arg8: memref<1x4x8x8xf32, #tpu.memory_space<vmem>>) attributes {dimension_semantics = [#tpu.dimension_semantics<parallel>, #tpu.dimension_semantics<parallel>], iteration_bounds = array<i64: 2, 1>, scalar_prefetch = 0 : i64, scratch_operands = 0 : i64, tpu.core_type = #tpu.core_type<tc>, window_params = [{transform_indices = @transform_0, window_bounds = array<i64: 1, 8, 32>}, {pipeline_mode = #tpu.pipeline_mode<synchronous>, transform_indices = @transform_1, window_bounds = array<i64: 32, 32>}, {pipeline_mode = #tpu.pipeline_mode<synchronous>, transform_indices = @transform_2, window_bounds = array<i64: 32, 32>}, {pipeline_mode = #tpu.pipeline_mode<synchronous>, transform_indices = @transform_3, window_bounds = array<i64: 32, 32>}, {transform_indices = @transform_4, window_bounds = array<i64: 1, 4, 8, 8>}, {transform_indices = @transform_5, window_bounds = array<i64: 1, 4, 8, 8>}, {transform_indices = @transform_6, window_bounds = array<i64: 1, 4, 8, 8>}]} {
    %c0 = arith.constant 0 : index
    %c0_0 = arith.constant 0 : index
    %c0_1 = arith.constant 0 : index
    %0 = vector.load %arg2[%c0, %c0_0, %c0_1] : memref<1x8x32xf32, #tpu.memory_space<vmem>>, vector<1x8x32xf32>
    %1 = vector.shape_cast %0 : vector<1x8x32xf32> to vector<8x32xf32>
    %c0_2 = arith.constant 0 : index
    %c0_3 = arith.constant 0 : index
    %2 = vector.load %arg3[%c0_2, %c0_3] : memref<32x32xf32, #tpu.memory_space<vmem>>, vector<32x32xf32>
    %cst = arith.constant dense<0.000000e+00> : vector<8x32xf32>
    %3 = tpu.matmul %1, %2, %cst {dimension_numbers = #tpu.dot_dimension_numbers<[1], [0], [0], [1], [0, 0, 1, 1], [], []>} : vector<8x32xf32>, vector<32x32xf32>, vector<8x32xf32> -> vector<8x32xf32>
    %4 = vector.extract_strided_slice %3 {offsets = [0, 0], sizes = [8, 8], strides = [1, 1]} : vector<8x32xf32> to vector<8x8xf32>
    %c0_4 = arith.constant 0 : index
    %c0_5 = arith.constant 0 : index
    %c0_6 = arith.constant 0 : index
    %c0_7 = arith.constant 0 : index
    %5 = vector.load %arg6[%c0_4, %c0_5, %c0_6, %c0_7] : memref<1x4x8x8xf32, #tpu.memory_space<vmem>>, vector<1x1x8x8xf32>
    %6 = vector.shape_cast %5 : vector<1x1x8x8xf32> to vector<8x8xf32>
    %7 = vector.shape_cast %4 : vector<8x8xf32> to vector<1x1x8x8xf32>
    tpu.vector_store %arg6[%c0_4, %c0_5, %c0_6, %c0_7], %7 {strides = array<i32>} : memref<1x4x8x8xf32, #tpu.memory_space<vmem>>, vector<1x1x8x8xf32>,
    %8 = vector.extract_strided_slice %3 {offsets = [0, 8], sizes = [8, 8], strides = [1, 1]} : vector<8x32xf32> to vector<8x8xf32>
    %c0_8 = arith.constant 0 : index
    %c1 = arith.constant 1 : index
    %c0_9 = arith.constant 0 : index
    %c0_10 = arith.constant 0 : index
    %9 = vector.load %arg6[%c0_8, %c1, %c0_9, %c0_10] : memref<1x4x8x8xf32, #tpu.memory_space<vmem>>, vector<1x1x8x8xf32>
    %10 = vector.shape_cast %9 : vector<1x1x8x8xf32> to vector<8x8xf32>
    %11 = vector.shape_cast %8 : vector<8x8xf32> to vector<1x1x8x8xf32>
    tpu.vector_store %arg6[%c0_8, %c1, %c0_9, %c0_10], %11 {strides = array<i32>} : memref<1x4x8x8xf32, #tpu.memory_space<vmem>>, vector<1x1x8x8xf32>,
    %12 = vector.extract_strided_slice %3 {offsets = [0, 16], sizes = [8, 8], strides = [1, 1]} : vector<8x32xf32> to vector<8x8xf32>
    %c0_11 = arith.constant 0 : index
    %c2 = arith.constant 2 : index
    %c0_12 = arith.constant 0 : index
    %c0_13 = arith.constant 0 : index
    %13 = vector.load %arg6[%c0_11, %c2, %c0_12, %c0_13] : memref<1x4x8x8xf32, #tpu.memory_space<vmem>>, vector<1x1x8x8xf32>
    %14 = vector.shape_cast %13 : vector<1x1x8x8xf32> to vector<8x8xf32>
    %15 = vector.shape_cast %12 : vector<8x8xf32> to vector<1x1x8x8xf32>
    tpu.vector_store %arg6[%c0_11, %c2, %c0_12, %c0_13], %15 {strides = array<i32>} : memref<1x4x8x8xf32, #tpu.memory_space<vmem>>, vector<1x1x8x8xf32>,
    %16 = vector.extract_strided_slice %3 {offsets = [0, 24], sizes = [8, 8], strides = [1, 1]} : vector<8x32xf32> to vector<8x8xf32>
    %c0_14 = arith.constant 0 : index
    %c3 = arith.constant 3 : index
    %c0_15 = arith.constant 0 : index
    %c0_16 = arith.constant 0 : index
    %17 = vector.load %arg6[%c0_14, %c3, %c0_15, %c0_16] : memref<1x4x8x8xf32, #tpu.memory_space<vmem>>, vector<1x1x8x8xf32>
    %18 = vector.shape_cast %17 : vector<1x1x8x8xf32> to vector<8x8xf32>
    %19 = vector.shape_cast %16 : vector<8x8xf32> to vector<1x1x8x8xf32>
    tpu.vector_store %arg6[%c0_14, %c3, %c0_15, %c0_16], %19 {strides = array<i32>} : memref<1x4x8x8xf32, #tpu.memory_space<vmem>>, vector<1x1x8x8xf32>,
    %c0_17 = arith.constant 0 : index
    %c0_18 = arith.constant 0 : index
    %20 = vector.load %arg4[%c0_17, %c0_18] : memref<32x32xf32, #tpu.memory_space<vmem>>, vector<32x32xf32>
    %cst_19 = arith.constant dense<0.000000e+00> : vector<8x32xf32>
    %21 = tpu.matmul %1, %20, %cst_19 {dimension_numbers = #tpu.dot_dimension_numbers<[1], [0], [0], [1], [0, 0, 1, 1], [], []>} : vector<8x32xf32>, vector<32x32xf32>, vector<8x32xf32> -> vector<8x32xf32>
    %22 = vector.extract_strided_slice %21 {offsets = [0, 0], sizes = [8, 8], strides = [1, 1]} : vector<8x32xf32> to vector<8x8xf32>
    %c0_20 = arith.constant 0 : index
    %c0_21 = arith.constant 0 : index
    %c0_22 = arith.constant 0 : index
    %c0_23 = arith.constant 0 : index
    %23 = vector.load %arg7[%c0_20, %c0_21, %c0_22, %c0_23] : memref<1x4x8x8xf32, #tpu.memory_space<vmem>>, vector<1x1x8x8xf32>
    %24 = vector.shape_cast %23 : vector<1x1x8x8xf32> to vector<8x8xf32>
    %25 = vector.shape_cast %22 : vector<8x8xf32> to vector<1x1x8x8xf32>
    tpu.vector_store %arg7[%c0_20, %c0_21, %c0_22, %c0_23], %25 {strides = array<i32>} : memref<1x4x8x8xf32, #tpu.memory_space<vmem>>, vector<1x1x8x8xf32>,
    %26 = vector.extract_strided_slice %21 {offsets = [0, 8], sizes = [8, 8], strides = [1, 1]} : vector<8x32xf32> to vector<8x8xf32>
    %c0_24 = arith.constant 0 : index
    %c1_25 = arith.constant 1 : index
    %c0_26 = arith.constant 0 : index
    %c0_27 = arith.constant 0 : index
    %27 = vector.load %arg7[%c0_24, %c1_25, %c0_26, %c0_27] : memref<1x4x8x8xf32, #tpu.memory_space<vmem>>, vector<1x1x8x8xf32>
    %28 = vector.shape_cast %27 : vector<1x1x8x8xf32> to vector<8x8xf32>
    %29 = vector.shape_cast %26 : vector<8x8xf32> to vector<1x1x8x8xf32>
    tpu.vector_store %arg7[%c0_24, %c1_25, %c0_26, %c0_27], %29 {strides = array<i32>} : memref<1x4x8x8xf32, #tpu.memory_space<vmem>>, vector<1x1x8x8xf32>,
    %30 = vector.extract_strided_slice %21 {offsets = [0, 16], sizes = [8, 8], strides = [1, 1]} : vector<8x32xf32> to vector<8x8xf32>
    %c0_28 = arith.constant 0 : index
    %c2_29 = arith.constant 2 : index
    %c0_30 = arith.constant 0 : index
    %c0_31 = arith.constant 0 : index
    %31 = vector.load %arg7[%c0_28, %c2_29, %c0_30, %c0_31] : memref<1x4x8x8xf32, #tpu.memory_space<vmem>>, vector<1x1x8x8xf32>
    %32 = vector.shape_cast %31 : vector<1x1x8x8xf32> to vector<8x8xf32>
    %33 = vector.shape_cast %30 : vector<8x8xf32> to vector<1x1x8x8xf32>
    tpu.vector_store %arg7[%c0_28, %c2_29, %c0_30, %c0_31], %33 {strides = array<i32>} : memref<1x4x8x8xf32, #tpu.memory_space<vmem>>, vector<1x1x8x8xf32>,
    %34 = vector.extract_strided_slice %21 {offsets = [0, 24], sizes = [8, 8], strides = [1, 1]} : vector<8x32xf32> to vector<8x8xf32>
    %c0_32 = arith.constant 0 : index
    %c3_33 = arith.constant 3 : index
    %c0_34 = arith.constant 0 : index
    %c0_35 = arith.constant 0 : index
    %35 = vector.load %arg7[%c0_32, %c3_33, %c0_34, %c0_35] : memref<1x4x8x8xf32, #tpu.memory_space<vmem>>, vector<1x1x8x8xf32>
    %36 = vector.shape_cast %35 : vector<1x1x8x8xf32> to vector<8x8xf32>
    %37 = vector.shape_cast %34 : vector<8x8xf32> to vector<1x1x8x8xf32>
    tpu.vector_store %arg7[%c0_32, %c3_33, %c0_34, %c0_35], %37 {strides = array<i32>} : memref<1x4x8x8xf32, #tpu.memory_space<vmem>>, vector<1x1x8x8xf32>,
    %c0_36 = arith.constant 0 : index
    %c0_37 = arith.constant 0 : index
    %38 = vector.load %arg5[%c0_36, %c0_37] : memref<32x32xf32, #tpu.memory_space<vmem>>, vector<32x32xf32>
    %cst_38 = arith.constant dense<0.000000e+00> : vector<8x32xf32>
    %39 = tpu.matmul %1, %38, %cst_38 {dimension_numbers = #tpu.dot_dimension_numbers<[1], [0], [0], [1], [0, 0, 1, 1], [], []>} : vector<8x32xf32>, vector<32x32xf32>, vector<8x32xf32> -> vector<8x32xf32>
    %40 = vector.extract_strided_slice %39 {offsets = [0, 0], sizes = [8, 8], strides = [1, 1]} : vector<8x32xf32> to vector<8x8xf32>
    %c0_39 = arith.constant 0 : index
    %c0_40 = arith.constant 0 : index
    %c0_41 = arith.constant 0 : index
    %c0_42 = arith.constant 0 : index
    %41 = vector.load %arg8[%c0_39, %c0_40, %c0_41, %c0_42] : memref<1x4x8x8xf32, #tpu.memory_space<vmem>>, vector<1x1x8x8xf32>
    %42 = vector.shape_cast %41 : vector<1x1x8x8xf32> to vector<8x8xf32>
    %43 = vector.shape_cast %40 : vector<8x8xf32> to vector<1x1x8x8xf32>
    tpu.vector_store %arg8[%c0_39, %c0_40, %c0_41, %c0_42], %43 {strides = array<i32>} : memref<1x4x8x8xf32, #tpu.memory_space<vmem>>, vector<1x1x8x8xf32>,
    %44 = vector.extract_strided_slice %39 {offsets = [0, 8], sizes = [8, 8], strides = [1, 1]} : vector<8x32xf32> to vector<8x8xf32>
    %c0_43 = arith.constant 0 : index
    %c1_44 = arith.constant 1 : index
    %c0_45 = arith.constant 0 : index
    %c0_46 = arith.constant 0 : index
    %45 = vector.load %arg8[%c0_43, %c1_44, %c0_45, %c0_46] : memref<1x4x8x8xf32, #tpu.memory_space<vmem>>, vector<1x1x8x8xf32>
    %46 = vector.shape_cast %45 : vector<1x1x8x8xf32> to vector<8x8xf32>
    %47 = vector.shape_cast %44 : vector<8x8xf32> to vector<1x1x8x8xf32>
    tpu.vector_store %arg8[%c0_43, %c1_44, %c0_45, %c0_46], %47 {strides = array<i32>} : memref<1x4x8x8xf32, #tpu.memory_space<vmem>>, vector<1x1x8x8xf32>,
    %48 = vector.extract_strided_slice %39 {offsets = [0, 16], sizes = [8, 8], strides = [1, 1]} : vector<8x32xf32> to vector<8x8xf32>
    %c0_47 = arith.constant 0 : index
    %c2_48 = arith.constant 2 : index
    %c0_49 = arith.constant 0 : index
    %c0_50 = arith.constant 0 : index
    %49 = vector.load %arg8[%c0_47, %c2_48, %c0_49, %c0_50] : memref<1x4x8x8xf32, #tpu.memory_space<vmem>>, vector<1x1x8x8xf32>
    %50 = vector.shape_cast %49 : vector<1x1x8x8xf32> to vector<8x8xf32>
    %51 = vector.shape_cast %48 : vector<8x8xf32> to vector<1x1x8x8xf32>
    tpu.vector_store %arg8[%c0_47, %c2_48, %c0_49, %c0_50], %51 {strides = array<i32>} : memref<1x4x8x8xf32, #tpu.memory_space<vmem>>, vector<1x1x8x8xf32>,
    %52 = vector.extract_strided_slice %39 {offsets = [0, 24], sizes = [8, 8], strides = [1, 1]} : vector<8x32xf32> to vector<8x8xf32>
    %c0_51 = arith.constant 0 : index
    %c3_52 = arith.constant 3 : index
    %c0_53 = arith.constant 0 : index
    %c0_54 = arith.constant 0 : index
    %53 = vector.load %arg8[%c0_51, %c3_52, %c0_53, %c0_54] : memref<1x4x8x8xf32, #tpu.memory_space<vmem>>, vector<1x1x8x8xf32>
    %54 = vector.shape_cast %53 : vector<1x1x8x8xf32> to vector<8x8xf32>
    %55 = vector.shape_cast %52 : vector<8x8xf32> to vector<1x1x8x8xf32>
    tpu.vector_store %arg8[%c0_51, %c3_52, %c0_53, %c0_54], %55 {strides = array<i32>} : memref<1x4x8x8xf32, #tpu.memory_space<vmem>>, vector<1x1x8x8xf32>,
    return
  }
  func.func @transform_0(%arg0: i32, %arg1: i32) -> (i32, i32, i32) {
    %c0_i32 = arith.constant 0 : i32
    %c0_i32_0 = arith.constant 0 : i32
    return %arg0, %arg1, %c0_i32 : i32, i32, i32
  }
  func.func @transform_1(%arg0: i32, %arg1: i32) -> (i32, i32) {
    %c0_i32 = arith.constant 0 : i32
    %c0_i32_0 = arith.constant 0 : i32
    %c0_i32_1 = arith.constant 0 : i32
    return %c0_i32, %c0_i32_0 : i32, i32
  }
  func.func @transform_2(%arg0: i32, %arg1: i32) -> (i32, i32) {
    %c0_i32 = arith.constant 0 : i32
    %c0_i32_0 = arith.constant 0 : i32
    %c0_i32_1 = arith.constant 0 : i32
    return %c0_i32, %c0_i32_0 : i32, i32
  }
  func.func @transform_3(%arg0: i32, %arg1: i32) -> (i32, i32) {
    %c0_i32 = arith.constant 0 : i32
    %c0_i32_0 = arith.constant 0 : i32
    %c0_i32_1 = arith.constant 0 : i32
    return %c0_i32, %c0_i32_0 : i32, i32
  }
  func.func @transform_4(%arg0: i32, %arg1: i32) -> (i32, i32, i32, i32) {
    %c0_i32 = arith.constant 0 : i32
    %c0_i32_0 = arith.constant 0 : i32
    %c0_i32_1 = arith.constant 0 : i32
    return %arg0, %c0_i32, %arg1, %c0_i32_0 : i32, i32, i32, i32
  }
  func.func @transform_5(%arg0: i32, %arg1: i32) -> (i32, i32, i32, i32) {
    %c0_i32 = arith.constant 0 : i32
    %c0_i32_0 = arith.constant 0 : i32
    %c0_i32_1 = arith.constant 0 : i32
    return %arg0, %c0_i32, %arg1, %c0_i32_0 : i32, i32, i32, i32
  }
  func.func @transform_6(%arg0: i32, %arg1: i32) -> (i32, i32, i32, i32) {
    %c0_i32 = arith.constant 0 : i32
    %c0_i32_0 = arith.constant 0 : i32
    %c0_i32_1 = arith.constant 0 : i32
    return %arg0, %c0_i32, %arg1, %c0_i32_0 : i32, i32, i32, i32
  }
}

</mosaic_0001>

<llo_original>
// kernel: tpu_custom_call.1
$region0: #{tpu_custom_call.1}
  #allocation0 [shape = 'u32[]', space=smem, size = 0x4, offset = 0x4, fixed_abs, tag = 'smem constant byte address 0x4 - core index']
  #allocation1 [shape = 'u32[144,128]{1,0:T(1,128)}', space=vmem, size = 0x12000, scoped, tag = 'internal scratch']
  %s0 = inlined_call_operand.hbm [shape: f32[2,8,32], index: 0, kind: input, shape index: {}]
  %s1 = inlined_call_operand.hbm [shape: f32[32,32], index: 1, kind: input, shape index: {}]
  %s2 = inlined_call_operand.hbm [shape: f32[32,32], index: 2, kind: input, shape index: {}]
  %s3 = inlined_call_operand.hbm [shape: f32[32,32], index: 3, kind: input, shape index: {}]
  %s4 = inlined_call_operand.hbm [shape: f32[2,4,8,8], index: 4, kind: output, shape index: {0}]
  %s5 = inlined_call_operand.hbm [shape: f32[2,4,8,8], index: 5, kind: output, shape index: {1}]
  %s6 = inlined_call_operand.hbm [shape: f32[2,4,8,8], index: 6, kind: output, shape index: {2}]
  %7 = xla_tuple %s4, %s5, %s6
  %s8 = sld [smem:[#allocation0]]
  $region81: #{tpu_custom_call.1} parent=0
    _
  %s10 = ssub.s32 1, %s8
  %s11 = scalar_select 0, %s10, %s8
  $region1: #{tpu_custom_call.1} parent=0
    #allocation2 [shape = 'u8[8192]{0}', space=vmem, size = 0x2000, scoped, tag = 'input window, operand 0']
    #allocation3 [shape = 's32[2]{0}', space=sflag, size = 0x8, scoped, tag = 'scoped memory for tpu_custom_call.1']
    #allocation4 [shape = 's32[2]{0}', space=sflag, size = 0x8, scoped, tag = 'scoped memory for tpu_custom_call.1']
    #allocation5 [shape = 'u8[16384]{0}', space=vmem, size = 0x4000, scoped, tag = 'input window, operand 1, single buffered']
    #allocation6 [shape = 's32[1]{0}', space=sflag, size = 0x4, scoped, tag = 'scoped memory for tpu_custom_call.1']
    #allocation7 [shape = 'u8[16384]{0}', space=vmem, size = 0x4000, scoped, tag = 'input window, operand 2, single buffered']
    #allocation8 [shape = 'u8[16384]{0}', space=vmem, size = 0x4000, scoped, tag = 'input window, operand 3, single buffered']
    #allocation9 [shape = 's32[1]{0}', space=sflag, size = 0x4, scoped, tag = 'scoped memory for tpu_custom_call.1']
    #allocation10 [shape = 'u8[32768]{0}', space=vmem, size = 0x8000, scoped, tag = 'output window, operand 0']
    #allocation11 [shape = 'u8[32768]{0}', space=vmem, size = 0x8000, scoped, tag = 'output window, operand 1']
    #allocation12 [shape = 's32[2]{0}', space=sflag, size = 0x8, scoped, tag = 'scoped memory for tpu_custom_call.1']
    #allocation13 [shape = 'u8[32768]{0}', space=vmem, size = 0x8000, scoped, tag = 'output window, operand 2']
    %12 = vsyncpa [#allocation3], 0
    %s13 = scalar_lea.sflag [#allocation3], 1
    %14 = vsyncpa %s13, 0
    %15 = vsyncpa [#allocation6], 0
    %16 = vsyncpa [#allocation9], 0
    %17 = vsyncpa [#allocation4], 0
    %s18 = scalar_lea.sflag [#allocation4], 1
    %19 = vsyncpa %s18, 0
    %20 = vsyncpa [#allocation12], 0
    %s21 = scalar_lea.sflag [#allocation12], 1
    %22 = vsyncpa %s21, 0
    loop: start=0, step=1, limit=4
    $region2: #{tpu_custom_call.1} parent=1 // loop_pre_header
      _
    $region3: #{tpu_custom_call.1} parent=1 // loop_header
      %s24 = sphi 0, %s28
      %p25 = scmp.ge.s32.totalorder %s24, 4
      %s31 = sphi 0, %s43
      %s32 = sphi 0, %s39
      %s33 = sphi 0, %s31
      %s34 = sphi 0, %s32
      %s35 = sphi 0, %s33
      %s36 = sphi 0, %s34
      %s48 = sphi 0, %s50
      %s51 = sphi 0, %s48
      %s52 = sphi 0, %s51
      %s68 = sphi 0, %s52
      %s72 = sphi 0, %s72
      %s74 = sphi 0, %s72
      %s75 = sphi 0, %s74
      %s89 = sphi 0, %s75
      %s93 = sphi 0, %s93
      %s95 = sphi 0, %s93
      %s96 = sphi 0, %s95
      %s110 = sphi 0, %s96
      %s114 = sphi 0, %s114
      %s116 = sphi 0, %s114
      %s117 = sphi 0, %s116
      %s131 = sphi 0, %s117
      %s139 = sphi 0, %s141
      %s142 = sphi 0, %s139
      %s143 = sphi 0, %s142
      %s159 = sphi 0, %s143
      %s167 = sphi 0, %s169
      %s170 = sphi 0, %s167
      %s171 = sphi 0, %s170
      %s187 = sphi 0, %s171
      %s195 = sphi 0, %s197
      %s198 = sphi 0, %s195
      %s199 = sphi 0, %s198
      %s215 = sphi 0, %s199
    $region4: #{tpu_custom_call.1} parent=1 // loop_header_branch
      %27 = sbr.rel (%p25) target = $region8
    $region5: #{tpu_custom_call.1} parent=1 // loop_body
      %s29 = ssub.s32 %s24, 1
      %s30 = ssub.s32 %s24, 2
      %s37 = sadd.s32 1, %s32
      %p38 = scmp.ge.s32.totalorder %s37, 1
      %s39 = scalar_select %p38, 0, %s37
      %s40 = sadd.s32 1, %s31
      %s41 = scalar_select %p38, %s40, %s31
      %p42 = scmp.ge.s32.totalorder %s41, 2
      %s43 = scalar_select %p42, 0, %s41
      %s44 = ssub.s32 %s31, %s43
      %s45 = ssub.s32 %s32, %s39
      %s46 = sor.u32 %s44, %s45
      %p47 = scmp.eq.s32.totalorder %s46, 0
      %s49 = sadd.s32 %s48, 1
      %s50 = scalar_select %p47, %s48, %s49
      %p53 = pneg %p47
      %p54 = scmp.eq.s32.totalorder %s24, 1
      %p55 = por %p53, %p54
      %p56 = scmp.ne.s32.totalorder %s48, %s51
      %p57 = scmp.eq.s32.totalorder %s24, 0
      %p58 = por %p56, %p57
      %p59 = scmp.ne.s32.totalorder %s48, %s51
      %p60 = scmp.eq.s32.totalorder %s29, 1
      %p61 = por %p59, %p60
      %p62 = scmp.ne.s32.totalorder %s51, %s52
      %p63 = scmp.eq.s32.totalorder %s29, 0
      %p64 = por %p62, %p63
      %p65 = scmp.ne.s32.totalorder %s51, %s52
      %p66 = scmp.eq.s32.totalorder %s30, 1
      %p67 = por %p65, %p66
      %p69 = scmp.ne.s32.totalorder %s52, %s68
      %p70 = scmp.eq.s32.totalorder %s30, 0
      %p71 = por %p69, %p70
      %s73 = sadd.s32 %s72, 1
      %p76 = scmp.eq.s32.totalorder %s24, 1
      %p77 = scmp.ne.s32.totalorder %s72, %s74
      %p78 = scmp.eq.s32.totalorder %s24, 0
      %p79 = por %p77, %p78
      %p80 = scmp.ne.s32.totalorder %s72, %s74
      %p81 = scmp.eq.s32.totalorder %s29, 1
      %p82 = por %p80, %p81
      %p83 = scmp.ne.s32.totalorder %s74, %s75
      %p84 = scmp.eq.s32.totalorder %s29, 0
      %p85 = por %p83, %p84
      %p86 = scmp.ne.s32.totalorder %s74, %s75
      %p87 = scmp.eq.s32.totalorder %s30, 1
      %p88 = por %p86, %p87
      %p90 = scmp.ne.s32.totalorder %s75, %s89
      %p91 = scmp.eq.s32.totalorder %s30, 0
      %p92 = por %p90, %p91
      %s94 = sadd.s32 %s93, 1
      %p97 = scmp.eq.s32.totalorder %s24, 1
      %p98 = scmp.ne.s32.totalorder %s93, %s95
      %p99 = scmp.eq.s32.totalorder %s24, 0
      %p100 = por %p98, %p99
      %p101 = scmp.ne.s32.totalorder %s93, %s95
      %p102 = scmp.eq.s32.totalorder %s29, 1
      %p103 = por %p101, %p102
      %p104 = scmp.ne.s32.totalorder %s95, %s96
      %p105 = scmp.eq.s32.totalorder %s29, 0
      %p106 = por %p104, %p105
      %p107 = scmp.ne.s32.totalorder %s95, %s96
      %p108 = scmp.eq.s32.totalorder %s30, 1
      %p109 = por %p107, %p108
      %p111 = scmp.ne.s32.totalorder %s96, %s110
      %p112 = scmp.eq.s32.totalorder %s30, 0
      %p113 = por %p111, %p112
      %s115 = sadd.s32 %s114, 1
      %p118 = scmp.eq.s32.totalorder %s24, 1
      %p119 = scmp.ne.s32.totalorder %s114, %s116
      %p120 = scmp.eq.s32.totalorder %s24, 0
      %p121 = por %p119, %p120
      %p122 = scmp.ne.s32.totalorder %s114, %s116
      %p123 = scmp.eq.s32.totalorder %s29, 1
      %p124 = por %p122, %p123
      %p125 = scmp.ne.s32.totalorder %s116, %s117
      %p126 = scmp.eq.s32.totalorder %s29, 0
      %p127 = por %p125, %p126
      %p128 = scmp.ne.s32.totalorder %s116, %s117
      %p129 = scmp.eq.s32.totalorder %s30, 1
      %p130 = por %p128, %p129
      %p132 = scmp.ne.s32.totalorder %s117, %s131
      %p133 = scmp.eq.s32.totalorder %s30, 0
      %p134 = por %p132, %p133
      %s135 = ssub.s32 %s31, %s43
      %s136 = ssub.s32 %s32, %s39
      %s137 = sor.u32 %s135, %s136
      %p138 = scmp.eq.s32.totalorder %s137, 0
      %s140 = sadd.s32 %s139, 1
      %s141 = scalar_select %p138, %s139, %s140
      %p144 = pneg %p138
      %p145 = scmp.eq.s32.totalorder %s24, 1
      %p146 = por %p144, %p145
      %p147 = scmp.ne.s32.totalorder %s139, %s142
      %p148 = scmp.eq.s32.totalorder %s24, 0
      %p149 = por %p147, %p148
      %p150 = scmp.ne.s32.totalorder %s139, %s142
      %p151 = scmp.eq.s32.totalorder %s29, 1
      %p152 = por %p150, %p151
      %p153 = scmp.ne.s32.totalorder %s142, %s143
      %p154 = scmp.eq.s32.totalorder %s29, 0
      %p155 = por %p153, %p154
      %p156 = scmp.ne.s32.totalorder %s142, %s143
      %p157 = scmp.eq.s32.totalorder %s30, 1
      %p158 = por %p156, %p157
      %p160 = scmp.ne.s32.totalorder %s143, %s159
      %p161 = scmp.eq.s32.totalorder %s30, 0
      %p162 = por %p160, %p161
      %s163 = ssub.s32 %s31, %s43
      %s164 = ssub.s32 %s32, %s39
      %s165 = sor.u32 %s163, %s164
      %p166 = scmp.eq.s32.totalorder %s165, 0
      %s168 = sadd.s32 %s167, 1
      %s169 = scalar_select %p166, %s167, %s168
      %p172 = pneg %p166
      %p173 = scmp.eq.s32.totalorder %s24, 1
      %p174 = por %p172, %p173
      %p175 = scmp.ne.s32.totalorder %s167, %s170
      %p176 = scmp.eq.s32.totalorder %s24, 0
      %p177 = por %p175, %p176
      %p178 = scmp.ne.s32.totalorder %s167, %s170
      %p179 = scmp.eq.s32.totalorder %s29, 1
      %p180 = por %p178, %p179
      %p181 = scmp.ne.s32.totalorder %s170, %s171
      %p182 = scmp.eq.s32.totalorder %s29, 0
      %p183 = por %p181, %p182
      %p184 = scmp.ne.s32.totalorder %s170, %s171
      %p185 = scmp.eq.s32.totalorder %s30, 1
      %p186 = por %p184, %p185
      %p188 = scmp.ne.s32.totalorder %s171, %s187
      %p189 = scmp.eq.s32.totalorder %s30, 0
      %p190 = por %p188, %p189
      %s191 = ssub.s32 %s31, %s43
      %s192 = ssub.s32 %s32, %s39
      %s193 = sor.u32 %s191, %s192
      %p194 = scmp.eq.s32.totalorder %s193, 0
      %s196 = sadd.s32 %s195, 1
      %s197 = scalar_select %p194, %s195, %s196
      %p200 = pneg %p194
      %p201 = scmp.eq.s32.totalorder %s24, 1
      %p202 = por %p200, %p201
      %p203 = scmp.ne.s32.totalorder %s195, %s198
      %p204 = scmp.eq.s32.totalorder %s24, 0
      %p205 = por %p203, %p204
      %p206 = scmp.ne.s32.totalorder %s195, %s198
      %p207 = scmp.eq.s32.totalorder %s29, 1
      %p208 = por %p206, %p207
      %p209 = scmp.ne.s32.totalorder %s198, %s199
      %p210 = scmp.eq.s32.totalorder %s29, 0
      %p211 = por %p209, %p210
      %p212 = scmp.ne.s32.totalorder %s198, %s199
      %p213 = scmp.eq.s32.totalorder %s30, 1
      %p214 = por %p212, %p213
      %p216 = scmp.ne.s32.totalorder %s199, %s215
      %p217 = scmp.eq.s32.totalorder %s30, 0
      %p218 = por %p216, %p217
      %p219 = scmp.le.s32.totalorder 1, %s24
      %p220 = scmp.lt.s32.totalorder %s24, 3
      %p221 = pnand %p219, %p220
      %p222 = pneg %p221
      // Predicated region
      $region9: #{tpu_custom_call.1} parent=5 // pred_check
        _
      $region10: #{tpu_custom_call.1} parent=5 // pred_check_branch
        %224 = sbr.rel (%p221) target = $region12
      $region11: #{tpu_custom_call.1} parent=5 // pred_region
        %s225 = ssub.s32 %s24, 1
        // Predicated region
        $region13: #{tpu_custom_call.1} parent=11 // pred_check
          %p226 = pneg %p85
        $region14: #{tpu_custom_call.1} parent=11 // pred_check_branch
          %228 = sbr.rel (%p226) target = $region16
        $region15: #{tpu_custom_call.1} parent=11 // pred_region
          %s230 = ssub.s32 512, 512
          %231 = vsyncadd [#allocation6], %s230
          %s232 = sshll.u32 [#allocation5], 4
          %s233 = int_to_ptr.vmem [resolvable:$true] %s232
          %238 = dma.hbm_to_vmem [thread:$0]  %s1, 512, %s233, [#allocation6], 128, 128, 8
        $region16: #{tpu_custom_call.1} parent=11 // pred_fallthru
          _
        // Predicated region
        $region17: #{tpu_custom_call.1} parent=11 // pred_check
          %p239 = pneg %p106
        $region18: #{tpu_custom_call.1} parent=11 // pred_check_branch
          %241 = sbr.rel (%p239) target = $region20
        $region19: #{tpu_custom_call.1} parent=11 // pred_region
          %s243 = ssub.s32 512, 512
          %244 = vsyncadd [#allocation6], %s243
          %s245 = sshll.u32 [#allocation7], 4
          %s246 = int_to_ptr.vmem [resolvable:$true] %s245
          %251 = dma.hbm_to_vmem [thread:$0]  %s2, 512, %s246, [#allocation6], 128, 128, 8
        $region20: #{tpu_custom_call.1} parent=11 // pred_fallthru
          _
        // Predicated region
        $region21: #{tpu_custom_call.1} parent=11 // pred_check
          %p252 = pneg %p127
        $region22: #{tpu_custom_call.1} parent=11 // pred_check_branch
          %254 = sbr.rel (%p252) target = $region24
        $region23: #{tpu_custom_call.1} parent=11 // pred_region
          %s256 = ssub.s32 512, 512
          %257 = vsyncadd [#allocation9], %s256
          %s258 = sshll.u32 [#allocation8], 4
          %s259 = int_to_ptr.vmem [resolvable:$true] %s258
          %264 = dma.hbm_to_vmem [thread:$0]  %s3, 512, %s259, [#allocation9], 128, 128, 8
        $region24: #{tpu_custom_call.1} parent=11 // pred_fallthru
          _
      $region12: #{tpu_custom_call.1} parent=5 // pred_fallthru
        _
      %p265 = scmp.lt.s32.totalorder %s24, 2
      // Predicated region
      $region25: #{tpu_custom_call.1} parent=5 // pred_check
        %p266 = pneg %p265
      $region26: #{tpu_custom_call.1} parent=5 // pred_check_branch
        %268 = sbr.rel (%p266) target = $region28
      $region27: #{tpu_custom_call.1} parent=5 // pred_region
        // Predicated region
        $region29: #{tpu_custom_call.1} parent=27 // pred_check
          %p269 = pneg %p58
        $region30: #{tpu_custom_call.1} parent=27 // pred_check_branch
          %271 = sbr.rel (%p269) target = $region32
        $region31: #{tpu_custom_call.1} parent=27 // pred_region
          %s272 = sand.u32 %s48, 1
          %s273 = scalar_lea.sflag [#allocation3], %s272
          %s274 = sand.u32 %s48, 1
          %s275 = smul.addr %s274, 8
          %s276 = scalar_lea.vmem [#allocation2], %s275
          %s278 = ssub.s32 128, 128
          %279 = vsyncadd %s273, %s278
          %s280 = sadd.s32 %s32, %s31
          %s281 = smul.addr %s280, 128
          %s282 = scalar_lea.hbm %s0, %s281
          %s284 = sshll.u32 %s276, 4
          %s285 = int_to_ptr.vmem [resolvable:$true] %s284
          %287 = dma.hbm_to_vmem [thread:$0]  %s282, 128, %s285, %s273
        $region32: #{tpu_custom_call.1} parent=27 // pred_fallthru
          _
      $region28: #{tpu_custom_call.1} parent=5 // pred_fallthru
        _
      %p288 = scmp.le.s32.totalorder 1, %s24
      %p289 = scmp.lt.s32.totalorder %s24, 3
      %p290 = pnand %p288, %p289
      %p291 = pneg %p290
      // Predicated region
      $region33: #{tpu_custom_call.1} parent=5 // pred_check
        _
      $region34: #{tpu_custom_call.1} parent=5 // pred_check_branch
        %293 = sbr.rel (%p290) target = $region36
      $region35: #{tpu_custom_call.1} parent=5 // pred_region
        %s294 = ssub.s32 %s24, 1
        %s295 = sand.u32 %s51, 1
        %s296 = scalar_lea.sflag [#allocation3], %s295
        %s297 = sand.u32 %s51, 1
        %s298 = smul.addr %s297, 8
        %s299 = scalar_lea.vmem [#allocation2], %s298
        // Predicated region
        $region37: #{tpu_custom_call.1} parent=35 // pred_check
          %p300 = pneg %p64
        $region38: #{tpu_custom_call.1} parent=35 // pred_check_branch
          %302 = sbr.rel (%p300) target = $region40
        $region39: #{tpu_custom_call.1} parent=35 // pred_region
          %303 = dma.done %s296, 128
        $region40: #{tpu_custom_call.1} parent=35 // pred_fallthru
          _
        // Predicated region
        $region41: #{tpu_custom_call.1} parent=35 // pred_check
          %p304 = pneg %p85
        $region42: #{tpu_custom_call.1} parent=35 // pred_check_branch
          %306 = sbr.rel (%p304) target = $region44
        $region43: #{tpu_custom_call.1} parent=35 // pred_region
          %307 = dma.done [#allocation6], 512
        $region44: #{tpu_custom_call.1} parent=35 // pred_fallthru
          _
        // Predicated region
        $region45: #{tpu_custom_call.1} parent=35 // pred_check
          %p308 = pneg %p106
        $region46: #{tpu_custom_call.1} parent=35 // pred_check_branch
          %310 = sbr.rel (%p308) target = $region48
        $region47: #{tpu_custom_call.1} parent=35 // pred_region
          %311 = dma.done [#allocation6], 512
        $region48: #{tpu_custom_call.1} parent=35 // pred_fallthru
          _
        // Predicated region
        $region49: #{tpu_custom_call.1} parent=35 // pred_check
          %p312 = pneg %p127
        $region50: #{tpu_custom_call.1} parent=35 // pred_check_branch
          %314 = sbr.rel (%p312) target = $region52
        $region51: #{tpu_custom_call.1} parent=35 // pred_region
          %315 = dma.done [#allocation9], 512
        $region52: #{tpu_custom_call.1} parent=35 // pred_fallthru
          _
        %s316 = sand.u32 %s51, 1
        %s317 = scalar_lea.sflag [#allocation3], %s316
        %s318 = sand.u32 %s51, 1
        %s319 = smul.addr %s318, 8
        %s320 = scalar_lea.vmem [#allocation2], %s319
        %p321 = pneg %p64
        %p322 = pneg %p61
        %p323 = pneg %p85
        %p324 = pneg %p82
        %p325 = pneg %p106
        %p326 = pneg %p103
        %p327 = pneg %p127
        %p328 = pneg %p124
        %p329 = pneg %p155
        %p330 = pneg %p152
        %s331 = sand.u32 %s142, 1
        %s332 = scalar_lea.sflag [#allocation4], %s331
        %s333 = sand.u32 %s142, 1
        %s334 = smul.addr %s333, 32
        %s335 = scalar_lea.vmem [#allocation10], %s334
        %p336 = pneg %p183
        %p337 = pneg %p180
        %s338 = sand.u32 %s29, 1
        %s339 = scalar_lea.sflag [#allocation12], %s338
        %s340 = sand.u32 %s170, 1
        %s341 = smul.addr %s340, 32
        %s342 = scalar_lea.vmem [#allocation11], %s341
        %p343 = pneg %p211
        %p344 = pneg %p208
        %s345 = sand.u32 %s29, 1
        %s346 = scalar_lea.sflag [#allocation12], %s345
        %s347 = sand.u32 %s198, 1
        %s348 = smul.addr %s347, 32
        %s349 = scalar_lea.vmem [#allocation13], %s348
        %v350 = vld [vmem:[%s299] sm:$0xff]
        %v351 = vld [vmem:[#allocation5] sm:$0xff]
        %v352 = vld [vmem:[#allocation5 + $0x8] sm:$0xff]
        %v353 = vld [vmem:[#allocation5 + $0x10] sm:$0xff]
        %v354 = vld [vmem:[#allocation5 + $0x18] sm:$0xff]
        %vm355 = vcmask 261120
        %v357 = vsel %vm355, %v350, 0
        %359 = vmatprep.subr.mxu0 0.0
        %360 = vmatpush1.msra.mxu0 %v351
        %361 = vmatprep.subr.mxu0 0.0
        %362 = vmatpush1.msra.mxu0 %v352
        %363 = vmatprep.subr.mxu0 0.0
        %364 = vmatpush1.msra.mxu0 %v353
        %365 = vmatprep.subr.mxu0 0.0
        %366 = vmatpush1.msra.mxu0 %v354
        %367 = vmatprep.subr.mxu0 0.0
        %368 = vmatpush1.msra.mxu0 0.0
        %369 = vmatprep.subr.mxu0 0.0
        %370 = vmatpush1.msra.mxu0 0.0
        %371 = vmatprep.subr.mxu0 0.0
        %372 = vmatpush1.msra.mxu0 0.0
        %373 = vmatprep.subr.mxu0 0.0
        %374 = vmatpush1.msra.mxu0 0.0
        %375 = vmatprep.subr.mxu0 0.0
        %376 = vmatpush1.msra.mxu0 0.0
        %377 = vmatprep.subr.mxu0 0.0
        %378 = vmatpush1.msra.mxu0 0.0
        %379 = vmatprep.subr.mxu0 0.0
        %380 = vmatpush1.msra.mxu0 0.0
        %381 = vmatprep.subr.mxu0 0.0
        %382 = vmatpush1.msra.mxu0 0.0
        %383 = vmatprep.subr.mxu0 0.0
        %384 = vmatpush1.msra.mxu0 0.0
        %385 = vmatprep.subr.mxu0 0.0
        %386 = vmatpush1.msra.mxu0 0.0
        %387 = vmatprep.subr.mxu0 0.0
        %388 = vmatpush1.msra.mxu0 0.0
        %389 = vmatprep.subr.mxu0 0.0
        %390 = vmatpush1.msra.mxu0 0.0
        %391 = vmatprep.subr.mxu0 0.0
        %392 = vmatpush1.msra.mxu0 0.0
        %393 = vmatprep.subr.mxu0 0.0
        %394 = vmatpush1.msra.mxu0 0.0
        %395 = vmatprep.subr.mxu0 0.0
        %396 = vmatpush1.msra.mxu0 0.0
        %397 = vmatprep.subr.mxu0 0.0
        %398 = vmatpush1.msra.mxu0 0.0
        %399 = vmatprep.subr.mxu0 0.0
        %400 = vmatpush1.msra.mxu0 0.0
        %401 = vmatprep.subr.mxu0 0.0
        %402 = vmatpush1.msra.mxu0 0.0
        %403 = vmatprep.subr.mxu0 0.0
        %404 = vmatpush1.msra.mxu0 0.0
        %405 = vmatprep.subr.mxu0 0.0
        %406 = vmatpush1.msra.mxu0 0.0
        %407 = vmatprep.subr.mxu0 0.0
        %408 = vmatpush1.msra.mxu0 0.0
        %409 = vmatprep.subr.mxu0 0.0
        %410 = vmatpush1.msra.mxu0 0.0
        %411 = vmatprep.subr.mxu0 0.0
        %412 = vmatpush1.msra.mxu0 0.0
        %413 = vmatprep.subr.mxu0 0.0
        %414 = vmatpush1.msra.mxu0 0.0
        %415 = vmatprep.subr.mxu0 0.0
        %416 = vmatpush1.msra.mxu0 0.0
        %417 = vmatprep.subr.mxu0 0.0
        %418 = vmatpush1.msra.mxu0 0.0
        %419 = vmatprep.subr.mxu0 0.0
        %420 = vmatpush1.msra.mxu0 0.0
        %421 = vmatprep.subr.mxu0 0.0
        %422 = vmatpush1.msra.mxu0 0.0
        %423 = vmatprep.mubr.f32.mxu0 0.0
        %424 = vmatmul.mubr.f32.gmra.mrb[0].mxu0 %v357
        %v425 = vpop.f32.mrb[0].mxu0
        %v426 = vadd.f32 0.0, %v425
        %v427 = vpop.f32.mrb[0].mxu0
        %428 = vdwg.mxu0
        %vm429 = vcmask 64512
        %430 = vst.msk [vmem:[%s335] sm:$0xff] %vm429, %v426
        %432 = vrot.lane.b32.xlu0 %v426, 120
        %v433 = vpop.permute.xlu0 %432
        %s435 = scalar_lea.vmem %s335, 8 [#allocation10]
        %436 = vst.msk [vmem:[%s435] sm:$0xff] %vm429, %v433
        %437 = vrot.lane.b32.xlu0 %v426, 112
        %v438 = vpop.permute.xlu0 %437
        %s440 = scalar_lea.vmem %s335, 16 [#allocation10]
        %441 = vst.msk [vmem:[%s440] sm:$0xff] %vm429, %v438
        %442 = vrot.lane.b32.xlu0 %v426, 104
        %v443 = vpop.permute.xlu0 %442
        %s445 = scalar_lea.vmem %s335, 24 [#allocation10]
        %446 = vst.msk [vmem:[%s445] sm:$0xff] %vm429, %v443
        %v447 = vld [vmem:[#allocation7] sm:$0xff]
        %v448 = vld [vmem:[#allocation7 + $0x8] sm:$0xff]
        %v449 = vld [vmem:[#allocation7 + $0x10] sm:$0xff]
        %v450 = vld [vmem:[#allocation7 + $0x18] sm:$0xff]
        %451 = vmatprep.subr.mxu0 0.0
        %452 = vmatpush1.msra.mxu0 %v447
        %453 = vmatprep.subr.mxu0 0.0
        %454 = vmatpush1.msra.mxu0 %v448
        %455 = vmatprep.subr.mxu0 0.0
        %456 = vmatpush1.msra.mxu0 %v449
        %457 = vmatprep.subr.mxu0 0.0
        %458 = vmatpush1.msra.mxu0 %v450
        %459 = vmatprep.subr.mxu0 0.0
        %460 = vmatpush1.msra.mxu0 0.0
        %461 = vmatprep.subr.mxu0 0.0
        %462 = vmatpush1.msra.mxu0 0.0
        %463 = vmatprep.subr.mxu0 0.0
        %464 = vmatpush1.msra.mxu0 0.0
        %465 = vmatprep.subr.mxu0 0.0
        %466 = vmatpush1.msra.mxu0 0.0
        %467 = vmatprep.subr.mxu0 0.0
        %468 = vmatpush1.msra.mxu0 0.0
        %469 = vmatprep.subr.mxu0 0.0
        %470 = vmatpush1.msra.mxu0 0.0
        %471 = vmatprep.subr.mxu0 0.0
        %472 = vmatpush1.msra.mxu0 0.0
        %473 = vmatprep.subr.mxu0 0.0
        %474 = vmatpush1.msra.mxu0 0.0
        %475 = vmatprep.subr.mxu0 0.0
        %476 = vmatpush1.msra.mxu0 0.0
        %477 = vmatprep.subr.mxu0 0.0
        %478 = vmatpush1.msra.mxu0 0.0
        %479 = vmatprep.subr.mxu0 0.0
        %480 = vmatpush1.msra.mxu0 0.0
        %481 = vmatprep.subr.mxu0 0.0
        %482 = vmatpush1.msra.mxu0 0.0
        %483 = vmatprep.subr.mxu0 0.0
        %484 = vmatpush1.msra.mxu0 0.0
        %485 = vmatprep.subr.mxu0 0.0
        %486 = vmatpush1.msra.mxu0 0.0
        %487 = vmatprep.subr.mxu0 0.0
        %488 = vmatpush1.msra.mxu0 0.0
        %489 = vmatprep.subr.mxu0 0.0
        %490 = vmatpush1.msra.mxu0 0.0
        %491 = vmatprep.subr.mxu0 0.0
        %492 = vmatpush1.msra.mxu0 0.0
        %493 = vmatprep.subr.mxu0 0.0
        %494 = vmatpush1.msra.mxu0 0.0
        %495 = vmatprep.subr.mxu0 0.0
        %496 = vmatpush1.msra.mxu0 0.0
        %497 = vmatprep.subr.mxu0 0.0
        %498 = vmatpush1.msra.mxu0 0.0
        %499 = vmatprep.subr.mxu0 0.0
        %500 = vmatpush1.msra.mxu0 0.0
        %501 = vmatprep.subr.mxu0 0.0
        %502 = vmatpush1.msra.mxu0 0.0
        %503 = vmatprep.subr.mxu0 0.0
        %504 = vmatpush1.msra.mxu0 0.0
        %505 = vmatprep.subr.mxu0 0.0
        %506 = vmatpush1.msra.mxu0 0.0
        %507 = vmatprep.subr.mxu0 0.0
        %508 = vmatpush1.msra.mxu0 0.0
        %509 = vmatprep.subr.mxu0 0.0
        %510 = vmatpush1.msra.mxu0 0.0
        %511 = vmatprep.subr.mxu0 0.0
        %512 = vmatpush1.msra.mxu0 0.0
        %513 = vmatprep.subr.mxu0 0.0
        %514 = vmatpush1.msra.mxu0 0.0
        %515 = vmatprep.mubr.f32.mxu0 0.0
        %516 = vmatmul.mubr.f32.gmra.mrb[0].mxu0 %v357
        %v517 = vpop.f32.mrb[0].mxu0
        %v518 = vadd.f32 0.0, %v517
        %v519 = vpop.f32.mrb[0].mxu0
        %520 = vdwg.mxu0
        %521 = vst.msk [vmem:[%s342] sm:$0xff] %vm429, %v518
        %523 = vrot.lane.b32.xlu0 %v518, 120
        %v524 = vpop.permute.xlu0 %523
        %s526 = scalar_lea.vmem %s342, 8 [#allocation11]
        %527 = vst.msk [vmem:[%s526] sm:$0xff] %vm429, %v524
        %528 = vrot.lane.b32.xlu0 %v518, 112
        %v529 = vpop.permute.xlu0 %528
        %s531 = scalar_lea.vmem %s342, 16 [#allocation11]
        %532 = vst.msk [vmem:[%s531] sm:$0xff] %vm429, %v529
        %533 = vrot.lane.b32.xlu0 %v518, 104
        %v534 = vpop.permute.xlu0 %533
        %s536 = scalar_lea.vmem %s342, 24 [#allocation11]
        %537 = vst.msk [vmem:[%s536] sm:$0xff] %vm429, %v534
        %v538 = vld [vmem:[#allocation8] sm:$0xff]
        %v539 = vld [vmem:[#allocation8 + $0x8] sm:$0xff]
        %v540 = vld [vmem:[#allocation8 + $0x10] sm:$0xff]
        %v541 = vld [vmem:[#allocation8 + $0x18] sm:$0xff]
        %542 = vmatprep.subr.mxu0 0.0
        %543 = vmatpush1.msra.mxu0 %v538
        %544 = vmatprep.subr.mxu0 0.0
        %545 = vmatpush1.msra.mxu0 %v539
        %546 = vmatprep.subr.mxu0 0.0
        %547 = vmatpush1.msra.mxu0 %v540
        %548 = vmatprep.subr.mxu0 0.0
        %549 = vmatpush1.msra.mxu0 %v541
        %550 = vmatprep.subr.mxu0 0.0
        %551 = vmatpush1.msra.mxu0 0.0
        %552 = vmatprep.subr.mxu0 0.0
        %553 = vmatpush1.msra.mxu0 0.0
        %554 = vmatprep.subr.mxu0 0.0
        %555 = vmatpush1.msra.mxu0 0.0
        %556 = vmatprep.subr.mxu0 0.0
        %557 = vmatpush1.msra.mxu0 0.0
        %558 = vmatprep.subr.mxu0 0.0
        %559 = vmatpush1.msra.mxu0 0.0
        %560 = vmatprep.subr.mxu0 0.0
        %561 = vmatpush1.msra.mxu0 0.0
        %562 = vmatprep.subr.mxu0 0.0
        %563 = vmatpush1.msra.mxu0 0.0
        %564 = vmatprep.subr.mxu0 0.0
        %565 = vmatpush1.msra.mxu0 0.0
        %566 = vmatprep.subr.mxu0 0.0
        %567 = vmatpush1.msra.mxu0 0.0
        %568 = vmatprep.subr.mxu0 0.0
        %569 = vmatpush1.msra.mxu0 0.0
        %570 = vmatprep.subr.mxu0 0.0
        %571 = vmatpush1.msra.mxu0 0.0
        %572 = vmatprep.subr.mxu0 0.0
        %573 = vmatpush1.msra.mxu0 0.0
        %574 = vmatprep.subr.mxu0 0.0
        %575 = vmatpush1.msra.mxu0 0.0
        %576 = vmatprep.subr.mxu0 0.0
        %577 = vmatpush1.msra.mxu0 0.0
        %578 = vmatprep.subr.mxu0 0.0
        %579 = vmatpush1.msra.mxu0 0.0
        %580 = vmatprep.subr.mxu0 0.0
        %581 = vmatpush1.msra.mxu0 0.0
        %582 = vmatprep.subr.mxu0 0.0
        %583 = vmatpush1.msra.mxu0 0.0
        %584 = vmatprep.subr.mxu0 0.0
        %585 = vmatpush1.msra.mxu0 0.0
        %586 = vmatprep.subr.mxu0 0.0
        %587 = vmatpush1.msra.mxu0 0.0
        %588 = vmatprep.subr.mxu0 0.0
        %589 = vmatpush1.msra.mxu0 0.0
        %590 = vmatprep.subr.mxu0 0.0
        %591 = vmatpush1.msra.mxu0 0.0
        %592 = vmatprep.subr.mxu0 0.0
        %593 = vmatpush1.msra.mxu0 0.0
        %594 = vmatprep.subr.mxu0 0.0
        %595 = vmatpush1.msra.mxu0 0.0
        %596 = vmatprep.subr.mxu0 0.0
        %597 = vmatpush1.msra.mxu0 0.0
        %598 = vmatprep.subr.mxu0 0.0
        %599 = vmatpush1.msra.mxu0 0.0
        %600 = vmatprep.subr.mxu0 0.0
        %601 = vmatpush1.msra.mxu0 0.0
        %602 = vmatprep.subr.mxu0 0.0
        %603 = vmatpush1.msra.mxu0 0.0
        %604 = vmatprep.subr.mxu0 0.0
        %605 = vmatpush1.msra.mxu0 0.0
        %606 = vmatprep.mubr.f32.mxu0 0.0
        %607 = vmatmul.mubr.f32.gmra.mrb[0].mxu0 %v357
        %v608 = vpop.f32.mrb[0].mxu0
        %v609 = vadd.f32 0.0, %v608
        %v610 = vpop.f32.mrb[0].mxu0
        %611 = vdwg.mxu0
        %612 = vst.msk [vmem:[%s349] sm:$0xff] %vm429, %v609
        %614 = vrot.lane.b32.xlu0 %v609, 120
        %v615 = vpop.permute.xlu0 %614
        %s617 = scalar_lea.vmem %s349, 8 [#allocation13]
        %618 = vst.msk [vmem:[%s617] sm:$0xff] %vm429, %v615
        %619 = vrot.lane.b32.xlu0 %v609, 112
        %v620 = vpop.permute.xlu0 %619
        %s622 = scalar_lea.vmem %s349, 16 [#allocation13]
        %623 = vst.msk [vmem:[%s622] sm:$0xff] %vm429, %v620
        %624 = vrot.lane.b32.xlu0 %v609, 104
        %v625 = vpop.permute.xlu0 %624
        %s627 = scalar_lea.vmem %s349, 24 [#allocation13]
        %628 = vst.msk [vmem:[%s627] sm:$0xff] %vm429, %v625
        %s629 = sand.u32 %s142, 1
        %s630 = scalar_lea.sflag [#allocation4], %s629
        %s631 = sand.u32 %s142, 1
        %s632 = smul.addr %s631, 32
        %s633 = scalar_lea.vmem [#allocation10], %s632
        %s634 = sand.u32 %s29, 1
        %s635 = scalar_lea.sflag [#allocation12], %s634
        %s636 = sand.u32 %s170, 1
        %s637 = smul.addr %s636, 32
        %s638 = scalar_lea.vmem [#allocation11], %s637
        %s639 = sand.u32 %s29, 1
        %s640 = scalar_lea.sflag [#allocation12], %s639
        %s641 = sand.u32 %s198, 1
        %s642 = smul.addr %s641, 32
        %s643 = scalar_lea.vmem [#allocation13], %s642
        // Predicated region
        $region53: #{tpu_custom_call.1} parent=35 // pred_check
          %p644 = pneg %p152
        $region54: #{tpu_custom_call.1} parent=35 // pred_check_branch
          %646 = sbr.rel (%p644) target = $region56
        $region55: #{tpu_custom_call.1} parent=35 // pred_region
          %s648 = ssub.s32 512, 512
          %649 = vsyncadd %s630, %s648
          %s650 = smul.addr %s33, 4
          %s651 = sadd.s32 %s34, %s650
          %s652 = smul.addr %s651, 128
          %s653 = scalar_lea.hbm %s4, %s652
          %s654 = sshll.u32 %s633, 4
          %s655 = int_to_ptr.vmem [resolvable:$true] %s654
          %660 = dma.vmem_to_hbm [thread:$0]  %s655, 512, %s653, %s630, 128, 128, 8
        $region56: #{tpu_custom_call.1} parent=35 // pred_fallthru
          _
        // Predicated region
        $region57: #{tpu_custom_call.1} parent=35 // pred_check
          %p661 = pneg %p180
        $region58: #{tpu_custom_call.1} parent=35 // pred_check_branch
          %663 = sbr.rel (%p661) target = $region60
        $region59: #{tpu_custom_call.1} parent=35 // pred_region
          %s665 = ssub.s32 512, 512
          %666 = vsyncadd %s635, %s665
          %s667 = smul.addr %s33, 4
          %s668 = sadd.s32 %s34, %s667
          %s669 = smul.addr %s668, 128
          %s670 = scalar_lea.hbm %s5, %s669
          %s671 = sshll.u32 %s638, 4
          %s672 = int_to_ptr.vmem [resolvable:$true] %s671
          %677 = dma.vmem_to_hbm [thread:$0]  %s672, 512, %s670, %s635, 128, 128, 8
        $region60: #{tpu_custom_call.1} parent=35 // pred_fallthru
          _
        // Predicated region
        $region61: #{tpu_custom_call.1} parent=35 // pred_check
          %p678 = pneg %p208
        $region62: #{tpu_custom_call.1} parent=35 // pred_check_branch
          %680 = sbr.rel (%p678) target = $region64
        $region63: #{tpu_custom_call.1} parent=35 // pred_region
          %s682 = ssub.s32 512, 512
          %683 = vsyncadd %s640, %s682
          %s684 = smul.addr %s33, 4
          %s685 = sadd.s32 %s34, %s684
          %s686 = smul.addr %s685, 128
          %s687 = scalar_lea.hbm %s6, %s686
          %s688 = sshll.u32 %s643, 4
          %s689 = int_to_ptr.vmem [resolvable:$true] %s688
          %694 = dma.vmem_to_hbm [thread:$0]  %s689, 512, %s687, %s640, 128, 128, 8
        $region64: #{tpu_custom_call.1} parent=35 // pred_fallthru
          _
      $region36: #{tpu_custom_call.1} parent=5 // pred_fallthru
        _
      %p695 = scmp.le.s32.totalorder 2, %s24
      // Predicated region
      $region65: #{tpu_custom_call.1} parent=5 // pred_check
        %p696 = pneg %p695
      $region66: #{tpu_custom_call.1} parent=5 // pred_check_branch
        %698 = sbr.rel (%p696) target = $region68
      $region67: #{tpu_custom_call.1} parent=5 // pred_region
        %s699 = ssub.s32 %s24, 2
        // Predicated region
        $region69: #{tpu_custom_call.1} parent=67 // pred_check
          %p700 = pneg %p158
        $region70: #{tpu_custom_call.1} parent=67 // pred_check_branch
          %702 = sbr.rel (%p700) target = $region72
        $region71: #{tpu_custom_call.1} parent=67 // pred_region
          %s703 = sand.u32 %s143, 1
          %s704 = scalar_lea.sflag [#allocation4], %s703
          %s705 = sand.u32 %s143, 1
          %s706 = smul.addr %s705, 32
          %s707 = scalar_lea.vmem [#allocation10], %s706
          %708 = dma.done %s704, 512
        $region72: #{tpu_custom_call.1} parent=67 // pred_fallthru
          _
        // Predicated region
        $region73: #{tpu_custom_call.1} parent=67 // pred_check
          %p709 = pneg %p186
        $region74: #{tpu_custom_call.1} parent=67 // pred_check_branch
          %711 = sbr.rel (%p709) target = $region76
        $region75: #{tpu_custom_call.1} parent=67 // pred_region
          %s712 = sand.u32 %s30, 1
          %s713 = scalar_lea.sflag [#allocation12], %s712
          %s714 = sand.u32 %s171, 1
          %s715 = smul.addr %s714, 32
          %s716 = scalar_lea.vmem [#allocation11], %s715
          %717 = dma.done %s713, 512
        $region76: #{tpu_custom_call.1} parent=67 // pred_fallthru
          _
        // Predicated region
        $region77: #{tpu_custom_call.1} parent=67 // pred_check
          %p718 = pneg %p214
        $region78: #{tpu_custom_call.1} parent=67 // pred_check_branch
          %720 = sbr.rel (%p718) target = $region80
        $region79: #{tpu_custom_call.1} parent=67 // pred_region
          %s721 = sand.u32 %s30, 1
          %s722 = scalar_lea.sflag [#allocation12], %s721
          %s723 = sand.u32 %s199, 1
          %s724 = smul.addr %s723, 32
          %s725 = scalar_lea.vmem [#allocation13], %s724
          %726 = dma.done %s722, 512
        $region80: #{tpu_custom_call.1} parent=67 // pred_fallthru
          _
      $region68: #{tpu_custom_call.1} parent=5 // pred_fallthru
        _
    $region6: #{tpu_custom_call.1} parent=1 // loop_footer
      %s28 = sadd.s32 1, %s24
    $region7: #{tpu_custom_call.1} parent=1 // loop_footer_branch
      %23 = sbr.rel target = $region3
    $region8: #{tpu_custom_call.1} parent=1 // loop_exit
      _
    %727 = vsyncpa [#allocation3], 1
    %s728 = scalar_lea.sflag [#allocation3], 1
    %729 = vsyncpa %s728, 1
    %730 = vsyncpa [#allocation6], 1
    %731 = vsyncpa [#allocation9], 1
    %732 = vsyncpa [#allocation4], 1
    %s733 = scalar_lea.sflag [#allocation4], 1
    %734 = vsyncpa %s733, 1
    %735 = vsyncpa [#allocation12], 1
    %s736 = scalar_lea.sflag [#allocation12], 1
    %737 = vsyncpa %s736, 1

</llo_original>
